<compile_context>
chip_gen: v6e
topology: v6e:2x2x1
jax: 0.10.0
libtpu: 0.0.40
codegen_flags: <defaults>
</compile_context>

<pallas_src>
import functools

import jax
import jax.numpy as jnp
from jax import lax
from jax.experimental import pallas as pl
from jax.experimental.pallas import tpu as pltpu

_LANES = 128
_SUBLANES = 8


def _round_up(v: int, m: int) -> int:
    return ((v + m - 1) // m) * m


def _tiling_defaults(itemsize: int):
    """Generation-dependent (tile_rows, num_parallel) defaults.

    tile_rows values are for f32; for narrower dtypes the row count is scaled
    up so the tile byte-size (and thus the DMA size) stays roughly constant.
    """
    try:
        kind = jax.devices()[0].device_kind.lower()
    except Exception:  # pragma: no cover - defensive only
        kind = ""
    if "7x" in kind or "v7" in kind:
        # 2 TensorCores, ~3.2 TB/s HBM: 4 MiB tiles, one parallel slab per TC.
        tile_rows, num_parallel = 8192, 2
    elif "v6" in kind:
        # single TC, ~1.4 TB/s HBM, 32 MiB scoped VMEM: 2 MiB tiles.
        tile_rows, num_parallel = 4096, 1
    elif "v5" in kind and ("lite" in kind or "v5e" in kind):
        # single TC, ~0.82 TB/s HBM, 16 MiB scoped VMEM: 1 MiB tiles.
        tile_rows, num_parallel = 2048, 1
    else:
        tile_rows, num_parallel = 4096, 1
    tile_rows *= max(1, 4 // max(1, itemsize))
    return tile_rows, num_parallel


def _partial_sum_kernel(x_ref, o_ref, *, tile_rows, chunk_rows, total_rows,
                        inner_tiles):
    """Streaming partial-sum reduction.

    grid = (num_parallel, inner_tiles):
      axis 0 "parallel"  : independent partial sums, one (8,128) output block
                           each (sharded across TensorCores on multi-TC parts).
      axis 1 "arbitrary" : sequential accumulation into the resident out block.

    x_ref : (tile_rows, 128) VMEM tile of the flattened input (native dtype).
    o_ref : (8, 128) f32 partial-sum block -- doubles as the accumulator.
    """
    p = pl.program_id(0)
    i = pl.program_id(1)

    @pl.when(i == 0)
    def _():
        o_ref[...] = jnp.zeros_like(o_ref)

    tile_idx = p * inner_tiles + i          # UNCLAMPED global tile index
    row0 = tile_idx * tile_rows
    n_chunks = tile_rows // chunk_rows      # static Python int

    def accumulate(masked):
        def body(g, acc):
            start = pl.multiple_of(g * chunk_rows, chunk_rows)
            chunk = x_ref[pl.ds(start, chunk_rows), :].astype(jnp.float32)
            if masked:
                # Zero rows past the end of the real data (ragged row tail
                # and clamped duplicate tiles).  Per-chunk iota keeps the
                # live-vreg footprint tiny.
                row_ids = (row0 + start) + lax.broadcasted_iota(
                    jnp.int32, (chunk_rows, _LANES), 0)
                chunk = jnp.where(row_ids < total_rows, chunk, 0.0)
            return acc + chunk

        acc = lax.fori_loop(
            0, n_chunks, body,
            jnp.zeros((chunk_rows, _LANES), jnp.float32),
            unroll=min(8, n_chunks))

        # Fold the (chunk_rows, 128) carry down to the (8, 128) output block.
        folded = acc[:_SUBLANES, :]
        for s in range(1, chunk_rows // _SUBLANES):
            folded = folded + acc[s * _SUBLANES:(s + 1) * _SUBLANES, :]
        o_ref[...] += folded

    # Fast path: every row of this tile is valid data -- no mask, no iota.
    @pl.when(row0 + tile_rows <= total_rows)
    def _():
        accumulate(masked=False)

    # Tail / over-covered tiles only: mask rows past the end of the data.
    @pl.when(row0 + tile_rows > total_rows)
    def _():
        accumulate(masked=True)


@functools.partial(jax.jit, static_argnames=("tile_rows", "num_parallel"))
def _gather_mean_impl(x: jax.Array, *, tile_rows: int,
                      num_parallel: int) -> jax.Array:
    n = x.size
    if n == 0:
        return jnp.float32(jnp.nan)

    flat = jnp.ravel(x)                             # native dtype, no f32 copy
    itemsize = jnp.dtype(x.dtype).itemsize
    packing = max(1, 4 // max(1, itemsize))         # rows per packed vreg / 8
    chunk_rows = _SUBLANES * packing                # one packed input vreg

    rows = n // _LANES
    rem = n - rows * _LANES

    # <128-element lane tail: tiny plain-jnp sum in the wrapper (no full-array
    # pad copy); the mean divides by the original n, so this is exact.
    tail_sum = jnp.float32(0.0)
    if rem:
        tail_sum = jnp.sum(flat[rows * _LANES:].astype(jnp.float32))

    if rows == 0:
        # Degenerate tiny tensor (e.g. a scalar loss): pure wrapper path.
        return tail_sum / jnp.float32(n)

    main = flat if rem == 0 else flat[:rows * _LANES]
    x2d = main.reshape(rows, _LANES)

    # Tile sizing: multiple of the dtype's packed-sublane chunk, never larger
    # than the data requires.
    tile_rows = max(chunk_rows, int(tile_rows))
    tile_rows = min(tile_rows, _round_up(rows, chunk_rows))
    tile_rows = _round_up(tile_rows, chunk_rows)

    num_tiles = pl.cdiv(rows, tile_rows)
    num_parallel = max(1, min(int(num_parallel), num_tiles))
    inner_tiles = pl.cdiv(num_tiles, num_parallel)

    if num_parallel * inner_tiles != num_tiles:
        # Over-covered (p, i) pairs re-read the last valid tile; the in-kernel
        # mask (triggered by the unclamped row0) zeroes their contribution.
        def x_index_map(p, i):
            return (jnp.minimum(p * inner_tiles + i, num_tiles - 1), 0)
    else:
        def x_index_map(p, i):
            return (p * inner_tiles + i, 0)

    kernel = functools.partial(
        _partial_sum_kernel,
        tile_rows=tile_rows,
        chunk_rows=chunk_rows,
        total_rows=rows,
        inner_tiles=inner_tiles,
    )

    partials = pl.pallas_call(
        kernel,
        out_shape=jax.ShapeDtypeStruct((num_parallel, _SUBLANES, _LANES),
                                       jnp.float32),
        grid=(num_parallel, inner_tiles),
        in_specs=[pl.BlockSpec((tile_rows, _LANES), x_index_map)],
        out_specs=pl.BlockSpec((None, _SUBLANES, _LANES),
                               lambda p, i: (p, 0, 0)),
        compiler_params=pltpu.CompilerParams(
            dimension_semantics=("parallel", "arbitrary")),
        cost_estimate=pl.CostEstimate(
            flops=rows * _LANES,
            transcendentals=0,
            bytes_accessed=rows * _LANES * itemsize),
    )(x2d)

    # Final cross-lane reduce + mean over the ORIGINAL element count.
    return (jnp.sum(partials) + tail_sum) / jnp.float32(n)


def pallas_gather_mean(x: jax.Array, *, tile_rows: int | None = None,
                       num_parallel: int | None = None) -> jax.Array:
    """Equivalent of `accelerator.gather(value).mean()` for a single-host
    array: scalar float32 mean over every element of `x`.

    TODO(synk): cross-device gather semantics are not implemented here; in a
    multi-device setting wrap this in jax.lax.pmean/psum (or shard_map).
    """
    if tile_rows is None or num_parallel is None:
        d_tile, d_par = _tiling_defaults(jnp.dtype(x.dtype).itemsize)
        tile_rows = d_tile if tile_rows is None else tile_rows
        num_parallel = d_par if num_parallel is None else num_parallel
    return _gather_mean_impl(x, tile_rows=int(tile_rows),
                             num_parallel=int(num_parallel))


class ModelForTrainingJAX:
    """Minimal JAX analogue of the PyTorch `ModelForTraining` ABC.

    Only the concrete (non-abstract) behaviour is reproduced; the tensor math
    inside `log()` runs through the Pallas kernel above.
    """

    def __init__(self):
        self._current_step = 0
        self._logs_at_step = {}
        self._logs_at_epoch = {}
        self._is_peft = False

    # --- concrete bookkeeping methods -------------------------------------
    def increment_step(self):
        self._current_step += 1

    def before_train_step(self):
        self.increment_step()

    def log(self, name: str, value, on_step: bool = True, on_epoch: bool = False):
        if isinstance(value, jax.Array):
            # gather(value).mean().item()  (single-host path; see TODO above)
            value = float(pallas_gather_mean(value))
        if on_step:
            self._logs_at_step[name] = value
        if on_epoch:
            self._logs_at_epoch.setdefault(name, []).append(value)

    # --- forward delegates to the (abstract) train_step --------------------
    def forward(self, *args, **kwargs):
        # TODO(synk): `train_step` is abstract in the source module; forward
        # has no defined compute of its own, so nothing further to translate.
        raise NotImplementedError("train_step is abstract in ModelForTraining")


if __name__ == "__main__":
    key = jax.random.PRNGKey(0)
    ka, kb, kc, kd = jax.random.split(key, 4)

    # A: the loss-tensor-like NCHW input from the spec, default tiling.
    a = jax.random.normal(ka, (2, 4, 16, 16), dtype=jnp.float32)
    out_a = jax.block_until_ready(pallas_gather_mean(a))
    ref_a = jnp.mean(a.astype(jnp.float32))
    assert jnp.allclose(out_a, ref_a, atol=1e-5, rtol=1e-4), (out_a, ref_a)

    # B: many tiles, parallel axis and an over-covered grid (clamp+zero path,
    # accumulator across the "arbitrary" axis).
    b = jax.random.normal(kb, (4, 4, 32, 32), dtype=jnp.float32)
    out_b = jax.block_until_ready(
        pallas_gather_mean(b, tile_rows=8, num_parallel=3))
    ref_b = jnp.mean(b.astype(jnp.float32))
    assert jnp.allclose(out_b, ref_b, atol=1e-5, rtol=1e-4), (out_b, ref_b)

    # C: ragged element count + native bf16 streaming (row-tail mask gated by
    # pl.when, lane tail summed in the wrapper).
    c = jax.random.normal(kc, (6, 7, 40), dtype=jnp.bfloat16)
    out_c = jax.block_until_ready(pallas_gather_mean(c))
    ref_c = jnp.mean(c.astype(jnp.float32))
    assert jnp.allclose(out_c, ref_c, atol=1e-4, rtol=1e-3), (out_c, ref_c)

    # D: tiny tensor (< one 128-lane row) -> pure wrapper fallback path.
    d = jax.random.normal(kd, (3, 5, 7), dtype=jnp.float32)
    out_d = jax.block_until_ready(pallas_gather_mean(d))
    ref_d = jnp.mean(d)
    assert jnp.allclose(out_d, ref_d, atol=1e-5, rtol=1e-4), (out_d, ref_d)

    # exercise the wrapper class path too
    model = ModelForTrainingJAX()
    model.before_train_step()
    model.log("loss", a, on_step=True, on_epoch=True)

    print("KERNEL_OK")
</pallas_src>

<mosaic_0001>
module attributes {stable_mosaic.version = 11 : i64} {
  func.func @_partial_sum_kernel(%arg0: i32, %arg1: i32, %arg2: memref<16x128xf32, #tpu.memory_space<vmem>>, %arg3: memref<1x8x128xf32, #tpu.memory_space<vmem>>) attributes {dimension_semantics = [#tpu.dimension_semantics<parallel>, #tpu.dimension_semantics<arbitrary>], iteration_bounds = array<i64: 1, 1>, scalar_prefetch = 0 : i64, scratch_operands = 0 : i64, tpu.core_type = #tpu.core_type<tc>, window_params = [{transform_indices = @transform_0, window_bounds = array<i64: 16, 128>}, {transform_indices = @transform_1, window_bounds = array<i64: 1, 8, 128>}]} {
    %c0_i32 = arith.constant 0 : i32
    %0 = arith.cmpi eq, %arg1, %c0_i32 : i32
    %1 = arith.extui %0 : i1 to i32
    %c0_i32_0 = arith.constant 0 : i32
    %2 = arith.cmpi ne, %1, %c0_i32_0 : i32
    scf.if %2 {
      %cst = arith.constant 0.000000e+00 : f32
      %14 = vector.broadcast %cst : f32 to vector<8x128xf32>
      %c0 = arith.constant 0 : index
      %c0_7 = arith.constant 0 : index
      %c0_8 = arith.constant 0 : index
      %15 = vector.load %arg3[%c0, %c0_7, %c0_8] : memref<1x8x128xf32, #tpu.memory_space<vmem>>, vector<1x8x128xf32>
      %16 = vector.shape_cast %15 : vector<1x8x128xf32> to vector<8x128xf32>
      %17 = vector.shape_cast %14 : vector<8x128xf32> to vector<1x8x128xf32>
      tpu.vector_store %arg3[%c0, %c0_7, %c0_8], %17 {strides = array<i32>} : memref<1x8x128xf32, #tpu.memory_space<vmem>>, vector<1x8x128xf32>,
    } else {
    }
    %c1_i32 = arith.constant 1 : i32
    %3 = arith.muli %arg0, %c1_i32 : i32
    %4 = arith.addi %3, %arg1 : i32
    %c16_i32 = arith.constant 16 : i32
    %5 = arith.muli %4, %c16_i32 : i32
    %c16_i32_1 = arith.constant 16 : i32
    %6 = arith.addi %5, %c16_i32_1 : i32
    %c16_i32_2 = arith.constant 16 : i32
    %7 = arith.cmpi sle, %6, %c16_i32_2 : i32
    %8 = arith.extui %7 : i1 to i32
    %c0_i32_3 = arith.constant 0 : i32
    %9 = arith.cmpi ne, %8, %c0_i32_3 : i32
    scf.if %9 {
      %cst = arith.constant 0.000000e+00 : f32
      %14 = vector.broadcast %cst : f32 to vector<8x128xf32>
      %c0_i32_7 = arith.constant 0 : i32
      %c8_i32 = arith.constant 8 : i32
      %15 = arith.muli %c0_i32_7, %c8_i32 : i32
      %16 = tpu.assume_multiple %15, 8 : i32
      %17 = arith.index_cast %16 : i32 to index
      %c0 = arith.constant 0 : index
      %18 = vector.load %arg2[%17, %c0] : memref<16x128xf32, #tpu.memory_space<vmem>>, vector<8x128xf32>
      %19 = arith.addf %14, %18 : vector<8x128xf32>
      %c1_i32_8 = arith.constant 1 : i32
      %c8_i32_9 = arith.constant 8 : i32
      %20 = arith.muli %c1_i32_8, %c8_i32_9 : i32
      %21 = tpu.assume_multiple %20, 8 : i32
      %22 = arith.index_cast %21 : i32 to index
      %c0_10 = arith.constant 0 : index
      %23 = vector.load %arg2[%22, %c0_10] : memref<16x128xf32, #tpu.memory_space<vmem>>, vector<8x128xf32>
      %24 = arith.addf %19, %23 : vector<8x128xf32>
      %c2_i32 = arith.constant 2 : i32
      %c0_11 = arith.constant 0 : index
      %c0_12 = arith.constant 0 : index
      %c0_13 = arith.constant 0 : index
      %25 = vector.load %arg3[%c0_11, %c0_12, %c0_13] : memref<1x8x128xf32, #tpu.memory_space<vmem>>, vector<1x8x128xf32>
      %26 = vector.shape_cast %25 : vector<1x8x128xf32> to vector<8x128xf32>
      %27 = arith.addf %26, %24 : vector<8x128xf32>
      %c0_14 = arith.constant 0 : index
      %c0_15 = arith.constant 0 : index
      %c0_16 = arith.constant 0 : index
      %28 = vector.load %arg3[%c0_14, %c0_15, %c0_16] : memref<1x8x128xf32, #tpu.memory_space<vmem>>, vector<1x8x128xf32>
      %29 = vector.shape_cast %28 : vector<1x8x128xf32> to vector<8x128xf32>
      %30 = vector.shape_cast %27 : vector<8x128xf32> to vector<1x8x128xf32>
      tpu.vector_store %arg3[%c0_14, %c0_15, %c0_16], %30 {strides = array<i32>} : memref<1x8x128xf32, #tpu.memory_space<vmem>>, vector<1x8x128xf32>,
    } else {
    }
    %c16_i32_4 = arith.constant 16 : i32
    %10 = arith.addi %5, %c16_i32_4 : i32
    %c16_i32_5 = arith.constant 16 : i32
    %11 = arith.cmpi sgt, %10, %c16_i32_5 : i32
    %12 = arith.extui %11 : i1 to i32
    %c0_i32_6 = arith.constant 0 : i32
    %13 = arith.cmpi ne, %12, %c0_i32_6 : i32
    scf.if %13 {
      %cst = arith.constant 0.000000e+00 : f32
      %14 = vector.broadcast %cst : f32 to vector<8x128xf32>
      %c0_i32_7 = arith.constant 0 : i32
      %c8_i32 = arith.constant 8 : i32
      %15 = arith.muli %c0_i32_7, %c8_i32 : i32
      %16 = tpu.assume_multiple %15, 8 : i32
      %17 = arith.index_cast %16 : i32 to index
      %c0 = arith.constant 0 : index
      %18 = vector.load %arg2[%17, %c0] : memref<16x128xf32, #tpu.memory_space<vmem>>, vector<8x128xf32>
      %19 = arith.addi %5, %16 : i32
      %20 = tpu.iota {dimensions = array<i32: 0>} : vector<8x128xi32>
      %21 = vector.broadcast %19 : i32 to vector<8x128xi32>
      %22 = arith.addi %21, %20 : vector<8x128xi32>
      %c16_i32_8 = arith.constant 16 : i32
      %23 = vector.broadcast %c16_i32_8 : i32 to vector<8x128xi32>
      %24 = arith.cmpi slt, %22, %23 : vector<8x128xi32>
      %cst_9 = arith.constant 0.000000e+00 : f32
      %25 = vector.broadcast %cst_9 : f32 to vector<8x128xf32>
      %26 = arith.select %24, %18, %25 : vector<8x128xi1>, vector<8x128xf32>
      %27 = arith.addf %14, %26 : vector<8x128xf32>
      %c1_i32_10 = arith.constant 1 : i32
      %c8_i32_11 = arith.constant 8 : i32
      %28 = arith.muli %c1_i32_10, %c8_i32_11 : i32
      %29 = tpu.assume_multiple %28, 8 : i32
      %30 = arith.index_cast %29 : i32 to index
      %c0_12 = arith.constant 0 : index
      %31 = vector.load %arg2[%30, %c0_12] : memref<16x128xf32, #tpu.memory_space<vmem>>, vector<8x128xf32>
      %32 = arith.addi %5, %29 : i32
      %33 = tpu.iota {dimensions = array<i32: 0>} : vector<8x128xi32>
      %34 = vector.broadcast %32 : i32 to vector<8x128xi32>
      %35 = arith.addi %34, %33 : vector<8x128xi32>
      %c16_i32_13 = arith.constant 16 : i32
      %36 = vector.broadcast %c16_i32_13 : i32 to vector<8x128xi32>
      %37 = arith.cmpi slt, %35, %36 : vector<8x128xi32>
      %cst_14 = arith.constant 0.000000e+00 : f32
      %38 = vector.broadcast %cst_14 : f32 to vector<8x128xf32>
      %39 = arith.select %37, %31, %38 : vector<8x128xi1>, vector<8x128xf32>
      %40 = arith.addf %27, %39 : vector<8x128xf32>
      %c2_i32 = arith.constant 2 : i32
      %c0_15 = arith.constant 0 : index
      %c0_16 = arith.constant 0 : index
      %c0_17 = arith.constant 0 : index
      %41 = vector.load %arg3[%c0_15, %c0_16, %c0_17] : memref<1x8x128xf32, #tpu.memory_space<vmem>>, vector<1x8x128xf32>
      %42 = vector.shape_cast %41 : vector<1x8x128xf32> to vector<8x128xf32>
      %43 = arith.addf %42, %40 : vector<8x128xf32>
      %c0_18 = arith.constant 0 : index
      %c0_19 = arith.constant 0 : index
      %c0_20 = arith.constant 0 : index
      %44 = vector.load %arg3[%c0_18, %c0_19, %c0_20] : memref<1x8x128xf32, #tpu.memory_space<vmem>>, vector<1x8x128xf32>
      %45 = vector.shape_cast %44 : vector<1x8x128xf32> to vector<8x128xf32>
      %46 = vector.shape_cast %43 : vector<8x128xf32> to vector<1x8x128xf32>
      tpu.vector_store %arg3[%c0_18, %c0_19, %c0_20], %46 {strides = array<i32>} : memref<1x8x128xf32, #tpu.memory_space<vmem>>, vector<1x8x128xf32>,
    } else {
    }
    return
  }
  func.func @transform_0(%arg0: i32, %arg1: i32) -> (i32, i32) {
    %c1_i32 = arith.constant 1 : i32
    %0 = arith.muli %arg0, %c1_i32 : i32
    %1 = arith.addi %0, %arg1 : i32
    %c0_i32 = arith.constant 0 : i32
    %c0_i32_0 = arith.constant 0 : i32
    return %1, %c0_i32 : i32, i32
  }
  func.func @transform_1(%arg0: i32, %arg1: i32) -> (i32, i32, i32) {
    %c0_i32 = arith.constant 0 : i32
    %c0_i32_0 = arith.constant 0 : i32
    %c0_i32_1 = arith.constant 0 : i32
    return %arg0, %c0_i32, %c0_i32_0 : i32, i32, i32
  }
}

</mosaic_0001>

<llo_original>
// kernel: _gather_mean_impl.1
$region0: #{_gather_mean_impl.1}
  #allocation0 [shape = 'u32[]', space=smem, size = 0x4, offset = 0x4, fixed_abs, tag = 'smem constant byte address 0x4 - core index']
  #allocation1 [shape = 'u32[144,128]{1,0:T(1,128)}', space=vmem, size = 0x12000, scoped, tag = 'internal scratch']
  %s0 = inlined_call_operand.vmem [shape: f32[16,128], index: 0, kind: input, shape index: {}]
  %s1 = inlined_call_operand.vmem [shape: f32[1,8,128], index: 1, kind: output, shape index: {}]
  %s2 = sld [smem:[#allocation0]]
  $region26: #{_gather_mean_impl.1} parent=0
    _
  %s4 = ssub.s32 1, %s2
  %s5 = scalar_select 0, %s4, %s2
  // Predicated region
  $region2: #{_gather_mean_impl.1} parent=0 // pred_check
    _
  $region3: #{_gather_mean_impl.1} parent=0 // pred_check_branch
    %7 = sbr.rel (0) target = $region5
  $region4: #{_gather_mean_impl.1} parent=0 // pred_region
    %s8 = sadd.s32 0, 0
    %s9 = smul.u32 2, %s8
    %p10 = scmp.lt.s32.totalorder %s9, 1
    %s11 = scalar_select %p10, %s9, 1
    %s12 = smul.addr %s11, 8
    %s13 = scalar_lea.vmem %s0, %s12
    %s14 = sadd.s32 0, 0
    %s15 = smul.u32 2, %s14
  $region5: #{_gather_mean_impl.1} parent=0 // pred_fallthru
    _
  %s16 = sadd.s32 0, 0
  %s17 = smul.u32 2, %s16
  %p18 = scmp.lt.s32.totalorder %s17, 1
  %s19 = scalar_select %p18, %s17, 1
  %s20 = smul.addr %s19, 8
  %s21 = scalar_lea.vmem %s0, %s20
  %s22 = sadd.s32 0, 0
  %s23 = smul.u32 2, %s22
  %p24 = scmp.lt.s32.totalorder %s23, 1
  %s25 = scalar_select %p24, %s23, 1
  %s26 = smul.addr %s25, 8
  %s27 = scalar_lea.vmem %s0, %s26
  %s28 = sadd.s32 0, 0
  %s29 = smul.u32 2, %s28
  %p30 = scmp.eq.s32.totalorder 0, 0
  // Predicated region
  $region6: #{_gather_mean_impl.1} parent=0 // pred_check
    %p31 = pneg %p30
  $region7: #{_gather_mean_impl.1} parent=0 // pred_check_branch
    %33 = sbr.rel (%p31) target = $region9
  $region8: #{_gather_mean_impl.1} parent=0 // pred_region
    %34 = vst [vmem:[%s1] sm:$0xff] 0.0
  $region9: #{_gather_mean_impl.1} parent=0 // pred_fallthru
    _
  %s35 = sadd.s32 0, 0
  %s36 = smul.u32 %s35, 16
  %s37 = sadd.s32 %s36, 16
  %p38 = scmp.le.s32.totalorder %s37, 16
  // Predicated region
  $region10: #{_gather_mean_impl.1} parent=0 // pred_check
    %p39 = pneg %p38
  $region11: #{_gather_mean_impl.1} parent=0 // pred_check_branch
    %41 = sbr.rel (%p39) target = $region13
  $region12: #{_gather_mean_impl.1} parent=0 // pred_region
    %v42 = vld [vmem:[%s27] sm:$0xff]
    %v43 = vadd.f32 %v42, 0.0
    %s44 = scalar_lea.vmem %s27, 8
    %v45 = vld [vmem:[%s44] sm:$0xff]
    %v46 = vadd.f32 %v43, %v45
    %v47 = vld [vmem:[%s1] sm:$0xff]
    %v48 = vadd.f32 %v47, %v46
    %49 = vst [vmem:[%s1] sm:$0xff] %v48
  $region13: #{_gather_mean_impl.1} parent=0 // pred_fallthru
    _
  %p50 = scmp.gt.s32.totalorder %s37, 16
  // Predicated region
  $region14: #{_gather_mean_impl.1} parent=0 // pred_check
    %p51 = pneg %p50
  $region15: #{_gather_mean_impl.1} parent=0 // pred_check_branch
    %53 = sbr.rel (%p51) target = $region17
  $region16: #{_gather_mean_impl.1} parent=0 // pred_region
    %v54 = vld [vmem:[%s27] sm:$0xff]
    %s55 = sadd.s32 %s36, 0
    %v56 = vlaneseq
    %v57 = vshrl.u32 %v56, 7
    %v58 = vstv %s55
    %v59 = vadd.s32 %v58, %v57
    %vm60 = vcmp.lt.s32.totalorder %v59, 16
    %v61 = vsel %vm60, %v54, 0.0
    %v62 = vadd.f32 %v61, 0.0
    %s63 = scalar_lea.vmem %s27, 8
    %v64 = vld [vmem:[%s63] sm:$0xff]
    %s65 = sadd.s32 %s36, 8
    %v66 = vstv %s65
    %v67 = vadd.s32 %v66, %v57
    %vm68 = vcmp.lt.s32.totalorder %v67, 16
    %v69 = vsel %vm68, %v64, 0.0
    %v70 = vadd.f32 %v62, %v69
    %v71 = vld [vmem:[%s1] sm:$0xff]
    %v72 = vadd.f32 %v71, %v70
    %73 = vst [vmem:[%s1] sm:$0xff] %v72
  $region17: #{_gather_mean_impl.1} parent=0 // pred_fallthru
    _
  // Predicated region
  $region18: #{_gather_mean_impl.1} parent=0 // pred_check
    _
  $region19: #{_gather_mean_impl.1} parent=0 // pred_check_branch
    %75 = sbr.rel (0) target = $region21
  $region20: #{_gather_mean_impl.1} parent=0 // pred_region
    _
  $region21: #{_gather_mean_impl.1} parent=0 // pred_fallthru
    _
  // Predicated region
  $region22: #{_gather_mean_impl.1} parent=0 // pred_check
    _
  $region23: #{_gather_mean_impl.1} parent=0 // pred_check_branch
    %77 = sbr.rel (0) target = $region25
  $region24: #{_gather_mean_impl.1} parent=0 // pred_region
    _
  $region25: #{_gather_mean_impl.1} parent=0 // pred_fallthru
    _

</llo_original>
